<compile_context>
chip_gen: v5e
topology: v5e:2x2
jax: 0.10.0
libtpu: 0.0.40
codegen_flags: <defaults>
</compile_context>

<pallas_src>
import functools

import jax
import jax.numpy as jnp
from jax.experimental import pallas as pl
from jax.experimental.pallas import tpu as pltpu

_LANE = 128          # lane width: feature dims padded to this (lane-dense output)
_SUBLANE_BF16 = 16   # bf16 sublane granule: node dim padded to this
_NEG = -1e30         # finite "-inf" for padded adjacency columns (see invariant above)


def _round_up(x, m):
    return ((x + m - 1) // m) * m


def _pad2d(a, rows, cols, value=0.0):
    r, c = a.shape
    return jnp.pad(a, ((0, rows - r), (0, cols - c)), constant_values=value)


def _gcn_kernel(adj_ref, x_ref,
                w1_ref, b1_ref,
                w2_ref, b2_ref,
                w3_ref, b3_ref,
                out_ref):
    # --- row-wise softmax(adjacency) in f32, computed once, reused 3x ---------
    a = adj_ref[...]                                      # (NP, NP) f32
    m = jnp.max(a, axis=1, keepdims=True)
    e = jnp.exp(a - m)                                    # padded cols -> exp(-huge) == 0
    s = jnp.sum(e, axis=1, keepdims=True)
    a_sm = (e * pl.reciprocal(s, approx=True)).astype(jnp.bfloat16)

    def layer(h_bf16, w_ref, b_ref):
        # softmax(A) @ H   (bf16 x bf16 -> f32 accumulate on the MXU)
        ah = jnp.dot(a_sm, h_bf16, preferred_element_type=jnp.float32)
        # Linear (weights pre-transposed + zero-padded in prepare_params) + bias + ReLU
        z = jnp.dot(ah.astype(jnp.bfloat16), w_ref[...],
                    preferred_element_type=jnp.float32)
        return jnp.maximum(z + b_ref[...], 0.0)           # f32 bias broadcast + ReLU

    h = layer(x_ref[...], w1_ref, b1_ref)                 # x already bf16
    h = layer(h.astype(jnp.bfloat16), w2_ref, b2_ref)
    h = layer(h.astype(jnp.bfloat16), w3_ref, b3_ref)
    out_ref[...] = h                                      # lane-dense f32 store


def prepare_params(params):
    """One-time hoist: pad, transpose and bf16-cast the PyTorch-convention
    parameters (w_i: (out_features, in_features), b_i: (out_features,)).
    Call once at parameter-setup time, reuse the result for every forward."""
    f_in = params["w1"].shape[1]
    hidden = params["w1"].shape[0]
    out_size = params["w3"].shape[0]
    fp = _round_up(f_in, _LANE)
    hp = _round_up(hidden, _LANE)
    op = _round_up(out_size, _LANE)
    prepared = {
        # Zero padding is exact: padded activation columns meet zero weight rows.
        "w1": _pad2d(params["w1"].T.astype(jnp.float32), fp, hp).astype(jnp.bfloat16),
        "w2": _pad2d(params["w2"].T.astype(jnp.float32), hp, hp).astype(jnp.bfloat16),
        "w3": _pad2d(params["w3"].T.astype(jnp.float32), hp, op).astype(jnp.bfloat16),
        "b1": _pad2d(params["b1"].reshape(1, -1).astype(jnp.float32), 1, hp),
        "b2": _pad2d(params["b2"].reshape(1, -1).astype(jnp.float32), 1, hp),
        "b3": _pad2d(params["b3"].reshape(1, -1).astype(jnp.float32), 1, op),
    }
    return prepared, out_size


@functools.partial(jax.jit, static_argnames=("out_size",))
def attention_gcn(adjacency, node_features, prepared, *, out_size):
    """Per-call path (jitted): pad the graph inputs, run the fused kernel,
    slice the real nodes / real output features back out."""
    n = adjacency.shape[0]
    np_ = _round_up(max(n, _SUBLANE_BF16), _SUBLANE_BF16)
    fp = prepared["w1"].shape[0]
    hp = prepared["w2"].shape[0]
    op = prepared["w3"].shape[1]

    # Adjacency: -1e30 column padding keeps the row-softmax denominator exact
    # (see invariant at top).  Padded rows produce garbage sliced away below.
    adj_p = _pad2d(adjacency.astype(jnp.float32), np_, np_, value=_NEG)
    # Activations: zero padding is exact; cast the MXU operand to bf16.
    x_p = _pad2d(node_features.astype(jnp.float32), np_, fp).astype(jnp.bfloat16)

    full = lambda arr: pl.BlockSpec(arr.shape, lambda: tuple(0 for _ in arr.shape))

    # Advisory cost estimate from the REAL padded dims (np_=16, not 128).
    flops = (2 * np_ * np_ * fp + 2 * np_ * fp * hp +      # layer 1
             2 * np_ * np_ * hp + 2 * np_ * hp * hp +      # layer 2
             2 * np_ * np_ * hp + 2 * np_ * hp * op)       # layer 3
    transcendentals = np_ * np_ + np_                      # exp + reciprocal
    bytes_accessed = (adj_p.size * 4 + x_p.size * 2 +
                      prepared["w1"].size * 2 + prepared["w2"].size * 2 +
                      prepared["w3"].size * 2 +
                      (prepared["b1"].size + prepared["b2"].size +
                       prepared["b3"].size) * 4 +
                      np_ * op * 4)

    out_p = pl.pallas_call(
        _gcn_kernel,
        out_shape=jax.ShapeDtypeStruct((np_, op), jnp.float32),
        grid=(),
        in_specs=[full(adj_p), full(x_p),
                  full(prepared["w1"]), full(prepared["b1"]),
                  full(prepared["w2"]), full(prepared["b2"]),
                  full(prepared["w3"]), full(prepared["b3"])],
        out_specs=pl.BlockSpec((np_, op), lambda: (0, 0)),
        compiler_params=pltpu.CompilerParams(
            # Actual usage is a few hundred KiB; keep an honest, small cap so
            # neighboring fusions keep their VMEM headroom (esp. on v7x).
            vmem_limit_bytes=2 * 1024 * 1024,
        ),
        cost_estimate=pl.CostEstimate(
            flops=flops,
            transcendentals=transcendentals,
            bytes_accessed=bytes_accessed,
        ),
    )(adj_p, x_p,
      prepared["w1"], prepared["b1"],
      prepared["w2"], prepared["b2"],
      prepared["w3"], prepared["b3"])

    return out_p[:n, :out_size]


def _reference(adjacency, node_features, params):
    a = jax.nn.softmax(adjacency, axis=1)
    h = node_features
    for i in (1, 2, 3):
        w = params[f"w{i}"]
        b = params[f"b{i}"]
        h = jax.nn.relu(jnp.dot(jnp.dot(a, h), w.T) + b)
    return h


if __name__ == "__main__":
    key = jax.random.PRNGKey(0)
    k_adj, k_x, k1, k2, k3, k4, k5, k6 = jax.random.split(key, 8)

    N = 8               # number of graph nodes
    input_size = 16
    hidden_size = 32
    output_size = 8

    adjacency = jax.random.normal(k_adj, (N, N), dtype=jnp.float32)
    node_features = jax.random.normal(k_x, (N, input_size), dtype=jnp.float32)

    # Deterministic parameter init (PyTorch Linear shapes: W=(out,in), b=(out,))
    params = {
        "w1": 0.1 * jax.random.normal(k1, (hidden_size, input_size), dtype=jnp.float32),
        "b1": 0.1 * jax.random.normal(k2, (hidden_size,), dtype=jnp.float32),
        "w2": 0.1 * jax.random.normal(k3, (hidden_size, hidden_size), dtype=jnp.float32),
        "b2": 0.1 * jax.random.normal(k4, (hidden_size,), dtype=jnp.float32),
        "w3": 0.1 * jax.random.normal(k5, (output_size, hidden_size), dtype=jnp.float32),
        "b3": 0.1 * jax.random.normal(k6, (output_size,), dtype=jnp.float32),
    }

    # One-time parameter preparation (pad + transpose + bf16 cast), hoisted
    # out of the per-call path per the performance review.
    prepared, out_size = prepare_params(params)
    prepared = jax.tree_util.tree_map(jax.block_until_ready, prepared)

    out = attention_gcn(adjacency, node_features, prepared, out_size=out_size)
    out = jax.block_until_ready(out)

    ref = _reference(adjacency, node_features, params)
    assert out.shape == (N, output_size)
    # bf16 MXU operands + approx reciprocal => relax tolerance vs. the f32 reference.
    assert jnp.allclose(out, ref, atol=1e-2, rtol=2e-2), "mismatch vs reference"

    print("KERNEL_OK")
</pallas_src>

<mosaic_0001>
module attributes {stable_mosaic.version = 11 : i64} {
  func.func @_gcn_kernel(%arg0: memref<16x16xf32, #tpu.memory_space<vmem>>, %arg1: memref<16x128xbf16, #tpu.memory_space<vmem>>, %arg2: memref<128x128xbf16, #tpu.memory_space<vmem>>, %arg3: memref<1x128xf32, #tpu.memory_space<vmem>>, %arg4: memref<128x128xbf16, #tpu.memory_space<vmem>>, %arg5: memref<1x128xf32, #tpu.memory_space<vmem>>, %arg6: memref<128x128xbf16, #tpu.memory_space<vmem>>, %arg7: memref<1x128xf32, #tpu.memory_space<vmem>>, %arg8: memref<16x128xf32, #tpu.memory_space<vmem>>) attributes {dimension_semantics = [], scalar_prefetch = 0 : i64, scratch_operands = 0 : i64, tpu.core_type = #tpu.core_type<tc>} {
    %c0 = arith.constant 0 : index
    %c0_0 = arith.constant 0 : index
    %0 = vector.load %arg0[%c0, %c0_0] : memref<16x16xf32, #tpu.memory_space<vmem>>, vector<16x16xf32>
    %cst = arith.constant dense<0xFF800000> : vector<16xf32>
    %1 = vector.multi_reduction <maximumf>, %0, %cst [1] : vector<16x16xf32> to vector<16xf32>
    %2 = vector.shape_cast %1 : vector<16xf32> to vector<16x1xf32>
    %3 = vector.broadcast %2 : vector<16x1xf32> to vector<16x16xf32>
    %4 = arith.subf %0, %3 : vector<16x16xf32>
    %5 = math.exp %4 : vector<16x16xf32>
    %cst_1 = arith.constant dense<0.000000e+00> : vector<16xf32>
    %6 = vector.multi_reduction <add>, %5, %cst_1 [1] : vector<16x16xf32> to vector<16xf32>
    %7 = vector.shape_cast %6 : vector<16xf32> to vector<16x1xf32>
    %8 = tpu.reciprocal %7 {approx = true} : vector<16x1xf32> -> vector<16x1xf32>
    %9 = vector.broadcast %8 : vector<16x1xf32> to vector<16x16xf32>
    %10 = arith.mulf %5, %9 : vector<16x16xf32>
    %11 = arith.truncf %10 : vector<16x16xf32> to vector<16x16xbf16>
    %c0_2 = arith.constant 0 : index
    %c0_3 = arith.constant 0 : index
    %12 = vector.load %arg1[%c0_2, %c0_3] : memref<16x128xbf16, #tpu.memory_space<vmem>>, vector<16x128xbf16>
    %cst_4 = arith.constant dense<0.000000e+00> : vector<16x128xf32>
    %13 = tpu.matmul %11, %12, %cst_4 {dimension_numbers = #tpu.dot_dimension_numbers<[1], [0], [0], [1], [0, 0, 1, 1], [], []>} : vector<16x16xbf16>, vector<16x128xbf16>, vector<16x128xf32> -> vector<16x128xf32>
    %14 = arith.truncf %13 : vector<16x128xf32> to vector<16x128xbf16>
    %c0_5 = arith.constant 0 : index
    %c0_6 = arith.constant 0 : index
    %15 = vector.load %arg2[%c0_5, %c0_6] : memref<128x128xbf16, #tpu.memory_space<vmem>>, vector<128x128xbf16>
    %cst_7 = arith.constant dense<0.000000e+00> : vector<16x128xf32>
    %16 = tpu.matmul %14, %15, %cst_7 {dimension_numbers = #tpu.dot_dimension_numbers<[1], [0], [0], [1], [0, 0, 1, 1], [], []>} : vector<16x128xbf16>, vector<128x128xbf16>, vector<16x128xf32> -> vector<16x128xf32>
    %c0_8 = arith.constant 0 : index
    %c0_9 = arith.constant 0 : index
    %17 = vector.load %arg3[%c0_8, %c0_9] : memref<1x128xf32, #tpu.memory_space<vmem>>, vector<1x128xf32>
    %18 = vector.broadcast %17 : vector<1x128xf32> to vector<16x128xf32>
    %19 = arith.addf %16, %18 : vector<16x128xf32>
    %cst_10 = arith.constant 0.000000e+00 : f32
    %20 = vector.broadcast %cst_10 : f32 to vector<16x128xf32>
    %21 = arith.maximumf %19, %20 : vector<16x128xf32>
    %22 = arith.truncf %21 : vector<16x128xf32> to vector<16x128xbf16>
    %cst_11 = arith.constant dense<0.000000e+00> : vector<16x128xf32>
    %23 = tpu.matmul %11, %22, %cst_11 {dimension_numbers = #tpu.dot_dimension_numbers<[1], [0], [0], [1], [0, 0, 1, 1], [], []>} : vector<16x16xbf16>, vector<16x128xbf16>, vector<16x128xf32> -> vector<16x128xf32>
    %24 = arith.truncf %23 : vector<16x128xf32> to vector<16x128xbf16>
    %c0_12 = arith.constant 0 : index
    %c0_13 = arith.constant 0 : index
    %25 = vector.load %arg4[%c0_12, %c0_13] : memref<128x128xbf16, #tpu.memory_space<vmem>>, vector<128x128xbf16>
    %cst_14 = arith.constant dense<0.000000e+00> : vector<16x128xf32>
    %26 = tpu.matmul %24, %25, %cst_14 {dimension_numbers = #tpu.dot_dimension_numbers<[1], [0], [0], [1], [0, 0, 1, 1], [], []>} : vector<16x128xbf16>, vector<128x128xbf16>, vector<16x128xf32> -> vector<16x128xf32>
    %c0_15 = arith.constant 0 : index
    %c0_16 = arith.constant 0 : index
    %27 = vector.load %arg5[%c0_15, %c0_16] : memref<1x128xf32, #tpu.memory_space<vmem>>, vector<1x128xf32>
    %28 = vector.broadcast %27 : vector<1x128xf32> to vector<16x128xf32>
    %29 = arith.addf %26, %28 : vector<16x128xf32>
    %cst_17 = arith.constant 0.000000e+00 : f32
    %30 = vector.broadcast %cst_17 : f32 to vector<16x128xf32>
    %31 = arith.maximumf %29, %30 : vector<16x128xf32>
    %32 = arith.truncf %31 : vector<16x128xf32> to vector<16x128xbf16>
    %cst_18 = arith.constant dense<0.000000e+00> : vector<16x128xf32>
    %33 = tpu.matmul %11, %32, %cst_18 {dimension_numbers = #tpu.dot_dimension_numbers<[1], [0], [0], [1], [0, 0, 1, 1], [], []>} : vector<16x16xbf16>, vector<16x128xbf16>, vector<16x128xf32> -> vector<16x128xf32>
    %34 = arith.truncf %33 : vector<16x128xf32> to vector<16x128xbf16>
    %c0_19 = arith.constant 0 : index
    %c0_20 = arith.constant 0 : index
    %35 = vector.load %arg6[%c0_19, %c0_20] : memref<128x128xbf16, #tpu.memory_space<vmem>>, vector<128x128xbf16>
    %cst_21 = arith.constant dense<0.000000e+00> : vector<16x128xf32>
    %36 = tpu.matmul %34, %35, %cst_21 {dimension_numbers = #tpu.dot_dimension_numbers<[1], [0], [0], [1], [0, 0, 1, 1], [], []>} : vector<16x128xbf16>, vector<128x128xbf16>, vector<16x128xf32> -> vector<16x128xf32>
    %c0_22 = arith.constant 0 : index
    %c0_23 = arith.constant 0 : index
    %37 = vector.load %arg7[%c0_22, %c0_23] : memref<1x128xf32, #tpu.memory_space<vmem>>, vector<1x128xf32>
    %38 = vector.broadcast %37 : vector<1x128xf32> to vector<16x128xf32>
    %39 = arith.addf %36, %38 : vector<16x128xf32>
    %cst_24 = arith.constant 0.000000e+00 : f32
    %40 = vector.broadcast %cst_24 : f32 to vector<16x128xf32>
    %41 = arith.maximumf %39, %40 : vector<16x128xf32>
    %c0_25 = arith.constant 0 : index
    %c0_26 = arith.constant 0 : index
    %42 = vector.load %arg8[%c0_25, %c0_26] : memref<16x128xf32, #tpu.memory_space<vmem>>, vector<16x128xf32>
    tpu.vector_store %arg8[%c0_25, %c0_26], %41 {strides = array<i32>} : memref<16x128xf32, #tpu.memory_space<vmem>>, vector<16x128xf32>,
    return
  }
}

</mosaic_0001>

<llo_original>
// kernel: attention_gcn.1
$region0: #{attention_gcn.1}
  #allocation0 [shape = 'u32[]', space=smem, size = 0x4, offset = 0x4, fixed_abs, tag = 'smem constant byte address 0x4 - core index']
  #allocation1 [shape = 'u32[72,128]{1,0:T(1,128)}', space=vmem, size = 0x9000, scoped, tag = 'internal scratch']
  %s0 = inlined_call_operand.vmem [shape: f32[16,16], index: 0, kind: input, shape index: {}]
  %s1 = inlined_call_operand.vmem [shape: bf16[16,128], index: 1, kind: input, shape index: {}]
  %s2 = inlined_call_operand.hbm [shape: bf16[128,128], index: 2, kind: input, shape index: {}]
  %s3 = inlined_call_operand.vmem [shape: f32[1,128], index: 3, kind: input, shape index: {}]
  %s4 = inlined_call_operand.hbm [shape: bf16[128,128], index: 4, kind: input, shape index: {}]
  %s5 = inlined_call_operand.vmem [shape: f32[1,128], index: 5, kind: input, shape index: {}]
  %s6 = inlined_call_operand.hbm [shape: bf16[128,128], index: 6, kind: input, shape index: {}]
  %s7 = inlined_call_operand.vmem [shape: f32[1,128], index: 7, kind: input, shape index: {}]
  %s8 = inlined_call_operand.vmem [shape: f32[16,128], index: 8, kind: output, shape index: {}]
  %s9 = sld [smem:[#allocation0]]
  $region54: #{attention_gcn.1} parent=0
    _
  %s11 = ssub.s32 1, %s9
  %s12 = scalar_select 0, %s11, %s9
  $region1: #{attention_gcn.1} parent=0
    #allocation2 [shape = 'u8[32768]{0}', space=vmem, size = 0x8000, scoped, tag = 'input window, operand 2, single buffered']
    #allocation3 [shape = 's32[1]{0}', space=sflag, size = 0x4, scoped, tag = 'scoped memory for attention_gcn.1']
    #allocation4 [shape = 'u8[32768]{0}', space=vmem, size = 0x8000, scoped, tag = 'input window, operand 4, single buffered']
    #allocation5 [shape = 's32[1]{0}', space=sflag, size = 0x4, scoped, tag = 'scoped memory for attention_gcn.1']
    #allocation6 [shape = 'u8[32768]{0}', space=vmem, size = 0x8000, scoped, tag = 'input window, operand 6, single buffered']
    %13 = vsyncpa [#allocation3], 0
    %14 = vsyncpa [#allocation5], 0
    // Predicated region
    $region2: #{attention_gcn.1} parent=1 // pred_check
      _
    $region3: #{attention_gcn.1} parent=1 // pred_check_branch
      %16 = sbr.rel (0) target = $region5
    $region4: #{attention_gcn.1} parent=1 // pred_region
      _
    $region5: #{attention_gcn.1} parent=1 // pred_fallthru
      _
    // Predicated region
    $region6: #{attention_gcn.1} parent=1 // pred_check
      _
    $region7: #{attention_gcn.1} parent=1 // pred_check_branch
      %18 = sbr.rel (0) target = $region9
    $region8: #{attention_gcn.1} parent=1 // pred_region
      _
    $region9: #{attention_gcn.1} parent=1 // pred_fallthru
      _
    // Predicated region
    $region10: #{attention_gcn.1} parent=1 // pred_check
      _
    $region11: #{attention_gcn.1} parent=1 // pred_check_branch
      %20 = sbr.rel (0) target = $region13
    $region12: #{attention_gcn.1} parent=1 // pred_region
      %22 = vsyncadd [#allocation3], 0
      %s23 = sshll.u32 %s2, 4
      %s24 = int_to_ptr.hbm [resolvable:$true] %s23
      %s25 = sshll.u32 [#allocation2], 4
      %s26 = int_to_ptr.vmem [resolvable:$true] %s25
      %31 = dma.hbm_to_vmem [thread:$0]  %s24, 1024, %s26, [#allocation3], 64, 64, 4
    $region13: #{attention_gcn.1} parent=1 // pred_fallthru
      _
    // Predicated region
    $region14: #{attention_gcn.1} parent=1 // pred_check
      _
    $region15: #{attention_gcn.1} parent=1 // pred_check_branch
      %33 = sbr.rel (0) target = $region17
    $region16: #{attention_gcn.1} parent=1 // pred_region
      _
    $region17: #{attention_gcn.1} parent=1 // pred_fallthru
      _
    // Predicated region
    $region18: #{attention_gcn.1} parent=1 // pred_check
      _
    $region19: #{attention_gcn.1} parent=1 // pred_check_branch
      %35 = sbr.rel (0) target = $region21
    $region20: #{attention_gcn.1} parent=1 // pred_region
      %37 = vsyncadd [#allocation5], 0
      %s38 = sshll.u32 %s4, 4
      %s39 = int_to_ptr.hbm [resolvable:$true] %s38
      %s40 = sshll.u32 [#allocation4], 4
      %s41 = int_to_ptr.vmem [resolvable:$true] %s40
      %46 = dma.hbm_to_vmem [thread:$0]  %s39, 1024, %s41, [#allocation5], 64, 64, 4
    $region21: #{attention_gcn.1} parent=1 // pred_fallthru
      _
    // Predicated region
    $region22: #{attention_gcn.1} parent=1 // pred_check
      _
    $region23: #{attention_gcn.1} parent=1 // pred_check_branch
      %48 = sbr.rel (0) target = $region25
    $region24: #{attention_gcn.1} parent=1 // pred_region
      _
    $region25: #{attention_gcn.1} parent=1 // pred_fallthru
      _
    // Predicated region
    $region26: #{attention_gcn.1} parent=1 // pred_check
      _
    $region27: #{attention_gcn.1} parent=1 // pred_check_branch
      %50 = sbr.rel (0) target = $region29
    $region28: #{attention_gcn.1} parent=1 // pred_region
      %52 = vsyncadd [#allocation5], 0
      %s53 = sshll.u32 %s6, 4
      %s54 = int_to_ptr.hbm [resolvable:$true] %s53
      %s55 = sshll.u32 [#allocation6], 4
      %s56 = int_to_ptr.vmem [resolvable:$true] %s55
      %61 = dma.hbm_to_vmem [thread:$0]  %s54, 1024, %s56, [#allocation5], 64, 64, 4
    $region29: #{attention_gcn.1} parent=1 // pred_fallthru
      _
    // Predicated region
    $region30: #{attention_gcn.1} parent=1 // pred_check
      _
    $region31: #{attention_gcn.1} parent=1 // pred_check_branch
      %63 = sbr.rel (0) target = $region33
    $region32: #{attention_gcn.1} parent=1 // pred_region
      _
    $region33: #{attention_gcn.1} parent=1 // pred_fallthru
      _
    // Predicated region
    $region34: #{attention_gcn.1} parent=1 // pred_check
      _
    $region35: #{attention_gcn.1} parent=1 // pred_check_branch
      %65 = sbr.rel (0) target = $region37
    $region36: #{attention_gcn.1} parent=1 // pred_region
      %67 = dma.done [#allocation3], 1024
    $region37: #{attention_gcn.1} parent=1 // pred_fallthru
      _
    // Predicated region
    $region38: #{attention_gcn.1} parent=1 // pred_check
      _
    $region39: #{attention_gcn.1} parent=1 // pred_check_branch
      %69 = sbr.rel (0) target = $region41
    $region40: #{attention_gcn.1} parent=1 // pred_region
      %71 = dma.done [#allocation5], 1024
    $region41: #{attention_gcn.1} parent=1 // pred_fallthru
      _
    // Predicated region
    $region42: #{attention_gcn.1} parent=1 // pred_check
      _
    $region43: #{attention_gcn.1} parent=1 // pred_check_branch
      %73 = sbr.rel (0) target = $region45
    $region44: #{attention_gcn.1} parent=1 // pred_region
      %75 = dma.done [#allocation5], 1024
    $region45: #{attention_gcn.1} parent=1 // pred_fallthru
      _
    %v77 = vld [vmem:[%s0] sm:$0xff]
    %v78 = vld [vmem:[%s0 + $0x8] sm:$0xff]
    %vm79 = vcmask 130048
    %v80 = vsel %vm79, %v77, -inf
    %81 = vmax.xlane.f32.xlu0 %v80
    %v82 = vpop.xlane.xlu0 %81
    %v83 = vsel %vm79, %v78, -inf
    %84 = vmax.xlane.f32.xlu0 %v83
    %v85 = vpop.xlane.xlu0 %84
    %v86 = vsub.f32 %v77, %v82
    %v87 = vsub.f32 %v78, %v85
    %v88 = vmul.f32 %v86, 1.442695
    %v89 = vpow.pop %v88
    %v90 = vmul.f32 %v87, 1.442695
    %v91 = vpow.pop %v90
    %v92 = vsel %vm79, %v89, 0.0
    %93 = vadd.xlane.f32.xlu0 %v92
    %v94 = vpop.xlane.xlu0 %93
    %v95 = vsel %vm79, %v91, 0.0
    %96 = vadd.xlane.f32.xlu0 %v95
    %v97 = vpop.xlane.xlu0 %96
    %v98 = vrcp.pop %v94
    %v99 = vrcp.pop %v97
    %v100 = vmul.f32 %v89, %v98
    %v101 = vmul.f32 %v91, %v99
    %v102 = vpack.c.bf16 %v101, %v100
    %v103 = vld [vmem:[%s1] sm:$0xf]
    %v104 = vld [vmem:[%s1 + $0x4] sm:$0xf]
    %v107 = vunpack.c.l.b16 %v103
    %v108 = vunpack.c.l.b16 %v104
    %v109 = vpack.c.b16 %v108, %v107
    %v112 = vsel %vm79, %v102, 0
    %114 = vmatpush.bf16.msra.mxu0 0
    %115 = vmatpush.bf16.msra.mxu0 0
    %116 = vmatpush.bf16.msra.mxu0 0
    %117 = vmatpush.bf16.msra.mxu0 0
    %118 = vmatpush.bf16.msra.mxu0 0
    %119 = vmatpush.bf16.msra.mxu0 0
    %120 = vmatpush.bf16.msra.mxu0 0
    %121 = vmatpush.bf16.msra.mxu0 %v109
    %122 = vmatmul.bf16.gmra.mxu0 %v112
    %v123 = vpop.f32.mrf.mxu0
    %v124 = vadd.f32 0.0, %v123
    %v125 = vpop.f32.mrf.mxu0
    %v126 = vadd.f32 0.0, %v125
    %127 = vdwg.mxu0
    %v128 = vpack.c.bf16 %v126, %v124
    %v129 = vld [vmem:[#allocation2] sm:$0xf]
    %v130 = vld [vmem:[#allocation2 + $0x4] sm:$0xf]
    %v131 = vld [vmem:[#allocation2 + $0x8] sm:$0xf]
    %v132 = vld [vmem:[#allocation2 + $0xc] sm:$0xf]
    %v133 = vld [vmem:[#allocation2 + $0x10] sm:$0xf]
    %v134 = vld [vmem:[#allocation2 + $0x14] sm:$0xf]
    %v135 = vld [vmem:[#allocation2 + $0x18] sm:$0xf]
    %v136 = vld [vmem:[#allocation2 + $0x1c] sm:$0xf]
    %v137 = vld [vmem:[#allocation2 + $0x20] sm:$0xf]
    %v138 = vld [vmem:[#allocation2 + $0x24] sm:$0xf]
    %v139 = vld [vmem:[#allocation2 + $0x28] sm:$0xf]
    %v140 = vld [vmem:[#allocation2 + $0x2c] sm:$0xf]
    %v141 = vld [vmem:[#allocation2 + $0x30] sm:$0xf]
    %v142 = vld [vmem:[#allocation2 + $0x34] sm:$0xf]
    %v143 = vld [vmem:[#allocation2 + $0x38] sm:$0xf]
    %v144 = vld [vmem:[#allocation2 + $0x3c] sm:$0xf]
    %v145 = vld [vmem:[%s3] sm:$0x1]
    %v147 = vperm.slane %v145, 0
    %v165 = vunpack.c.l.b16 %v129
    %v166 = vunpack.c.l.b16 %v130
    %v167 = vunpack.c.l.b16 %v131
    %v168 = vunpack.c.l.b16 %v132
    %v169 = vunpack.c.l.b16 %v133
    %v170 = vunpack.c.l.b16 %v134
    %v171 = vunpack.c.l.b16 %v135
    %v172 = vunpack.c.l.b16 %v136
    %v173 = vunpack.c.l.b16 %v137
    %v174 = vunpack.c.l.b16 %v138
    %v175 = vunpack.c.l.b16 %v139
    %v176 = vunpack.c.l.b16 %v140
    %v177 = vunpack.c.l.b16 %v141
    %v178 = vunpack.c.l.b16 %v142
    %v179 = vunpack.c.l.b16 %v143
    %v180 = vunpack.c.l.b16 %v144
    %v181 = vpack.c.b16 %v166, %v165
    %v182 = vpack.c.b16 %v168, %v167
    %v183 = vpack.c.b16 %v170, %v169
    %v184 = vpack.c.b16 %v172, %v171
    %v185 = vpack.c.b16 %v174, %v173
    %v186 = vpack.c.b16 %v176, %v175
    %v187 = vpack.c.b16 %v178, %v177
    %v188 = vpack.c.b16 %v180, %v179
    %197 = vmatpush.bf16.msra.mxu0 %v188
    %198 = vmatpush.bf16.msra.mxu0 %v187
    %199 = vmatpush.bf16.msra.mxu0 %v186
    %200 = vmatpush.bf16.msra.mxu0 %v185
    %201 = vmatpush.bf16.msra.mxu0 %v184
    %202 = vmatpush.bf16.msra.mxu0 %v183
    %203 = vmatpush.bf16.msra.mxu0 %v182
    %204 = vmatpush.bf16.msra.mxu0 %v181
    %205 = vmatmul.bf16.gmra.mxu0 %v128
    %v206 = vpop.f32.mrf.mxu0
    %v207 = vadd.f32 %v147, %v206
    %v208 = vpop.f32.mrf.mxu0
    %v209 = vadd.f32 %v147, %v208
    %210 = vdwg.mxu0
    %v211 = vmax.f32 %v207, 0.0
    %v212 = vmax.f32 %v209, 0.0
    %v213 = vpack.c.bf16 %v212, %v211
    %214 = vmatpush.bf16.msra.mxu0 0
    %215 = vmatpush.bf16.msra.mxu0 0
    %216 = vmatpush.bf16.msra.mxu0 0
    %217 = vmatpush.bf16.msra.mxu0 0
    %218 = vmatpush.bf16.msra.mxu0 0
    %219 = vmatpush.bf16.msra.mxu0 0
    %220 = vmatpush.bf16.msra.mxu0 0
    %221 = vmatpush.bf16.msra.mxu0 %v213
    %222 = vmatmul.bf16.gmra.mxu0 %v112
    %v223 = vpop.f32.mrf.mxu0
    %v224 = vadd.f32 0.0, %v223
    %v225 = vpop.f32.mrf.mxu0
    %v226 = vadd.f32 0.0, %v225
    %227 = vdwg.mxu0
    %v228 = vpack.c.bf16 %v226, %v224
    %v229 = vld [vmem:[#allocation4] sm:$0xf]
    %v230 = vld [vmem:[#allocation4 + $0x4] sm:$0xf]
    %v231 = vld [vmem:[#allocation4 + $0x8] sm:$0xf]
    %v232 = vld [vmem:[#allocation4 + $0xc] sm:$0xf]
    %v233 = vld [vmem:[#allocation4 + $0x10] sm:$0xf]
    %v234 = vld [vmem:[#allocation4 + $0x14] sm:$0xf]
    %v235 = vld [vmem:[#allocation4 + $0x18] sm:$0xf]
    %v236 = vld [vmem:[#allocation4 + $0x1c] sm:$0xf]
    %v237 = vld [vmem:[#allocation4 + $0x20] sm:$0xf]
    %v238 = vld [vmem:[#allocation4 + $0x24] sm:$0xf]
    %v239 = vld [vmem:[#allocation4 + $0x28] sm:$0xf]
    %v240 = vld [vmem:[#allocation4 + $0x2c] sm:$0xf]
    %v241 = vld [vmem:[#allocation4 + $0x30] sm:$0xf]
    %v242 = vld [vmem:[#allocation4 + $0x34] sm:$0xf]
    %v243 = vld [vmem:[#allocation4 + $0x38] sm:$0xf]
    %v244 = vld [vmem:[#allocation4 + $0x3c] sm:$0xf]
    %v245 = vld [vmem:[%s5] sm:$0x1]
    %v247 = vperm.slane %v245, 0
    %v265 = vunpack.c.l.b16 %v229
    %v266 = vunpack.c.l.b16 %v230
    %v267 = vunpack.c.l.b16 %v231
    %v268 = vunpack.c.l.b16 %v232
    %v269 = vunpack.c.l.b16 %v233
    %v270 = vunpack.c.l.b16 %v234
    %v271 = vunpack.c.l.b16 %v235
    %v272 = vunpack.c.l.b16 %v236
    %v273 = vunpack.c.l.b16 %v237
    %v274 = vunpack.c.l.b16 %v238
    %v275 = vunpack.c.l.b16 %v239
    %v276 = vunpack.c.l.b16 %v240
    %v277 = vunpack.c.l.b16 %v241
    %v278 = vunpack.c.l.b16 %v242
    %v279 = vunpack.c.l.b16 %v243
    %v280 = vunpack.c.l.b16 %v244
    %v281 = vpack.c.b16 %v266, %v265
    %v282 = vpack.c.b16 %v268, %v267
    %v283 = vpack.c.b16 %v270, %v269
    %v284 = vpack.c.b16 %v272, %v271
    %v285 = vpack.c.b16 %v274, %v273
    %v286 = vpack.c.b16 %v276, %v275
    %v287 = vpack.c.b16 %v278, %v277
    %v288 = vpack.c.b16 %v280, %v279
    %297 = vmatpush.bf16.msra.mxu0 %v288
    %298 = vmatpush.bf16.msra.mxu0 %v287
    %299 = vmatpush.bf16.msra.mxu0 %v286
    %300 = vmatpush.bf16.msra.mxu0 %v285
    %301 = vmatpush.bf16.msra.mxu0 %v284
    %302 = vmatpush.bf16.msra.mxu0 %v283
    %303 = vmatpush.bf16.msra.mxu0 %v282
    %304 = vmatpush.bf16.msra.mxu0 %v281
    %305 = vmatmul.bf16.gmra.mxu0 %v228
    %v306 = vpop.f32.mrf.mxu0
    %v307 = vadd.f32 %v247, %v306
    %v308 = vpop.f32.mrf.mxu0
    %v309 = vadd.f32 %v247, %v308
    %310 = vdwg.mxu0
    %v311 = vmax.f32 %v307, 0.0
    %v312 = vmax.f32 %v309, 0.0
    %v313 = vpack.c.bf16 %v312, %v311
    %314 = vmatpush.bf16.msra.mxu0 0
    %315 = vmatpush.bf16.msra.mxu0 0
    %316 = vmatpush.bf16.msra.mxu0 0
    %317 = vmatpush.bf16.msra.mxu0 0
    %318 = vmatpush.bf16.msra.mxu0 0
    %319 = vmatpush.bf16.msra.mxu0 0
    %320 = vmatpush.bf16.msra.mxu0 0
    %321 = vmatpush.bf16.msra.mxu0 %v313
    %322 = vmatmul.bf16.gmra.mxu0 %v112
    %v323 = vpop.f32.mrf.mxu0
    %v324 = vadd.f32 0.0, %v323
    %v325 = vpop.f32.mrf.mxu0
    %v326 = vadd.f32 0.0, %v325
    %327 = vdwg.mxu0
    %v328 = vpack.c.bf16 %v326, %v324
    %v329 = vld [vmem:[#allocation6] sm:$0xf]
    %v330 = vld [vmem:[#allocation6 + $0x4] sm:$0xf]
    %v331 = vld [vmem:[#allocation6 + $0x8] sm:$0xf]
    %v332 = vld [vmem:[#allocation6 + $0xc] sm:$0xf]
    %v333 = vld [vmem:[#allocation6 + $0x10] sm:$0xf]
    %v334 = vld [vmem:[#allocation6 + $0x14] sm:$0xf]
    %v335 = vld [vmem:[#allocation6 + $0x18] sm:$0xf]
    %v336 = vld [vmem:[#allocation6 + $0x1c] sm:$0xf]
    %v337 = vld [vmem:[#allocation6 + $0x20] sm:$0xf]
    %v338 = vld [vmem:[#allocation6 + $0x24] sm:$0xf]
    %v339 = vld [vmem:[#allocation6 + $0x28] sm:$0xf]
    %v340 = vld [vmem:[#allocation6 + $0x2c] sm:$0xf]
    %v341 = vld [vmem:[#allocation6 + $0x30] sm:$0xf]
    %v342 = vld [vmem:[#allocation6 + $0x34] sm:$0xf]
    %v343 = vld [vmem:[#allocation6 + $0x38] sm:$0xf]
    %v344 = vld [vmem:[#allocation6 + $0x3c] sm:$0xf]
    %v345 = vld [vmem:[%s7] sm:$0x1]
    %v347 = vperm.slane %v345, 0
    %v365 = vunpack.c.l.b16 %v329
    %v366 = vunpack.c.l.b16 %v330
    %v367 = vunpack.c.l.b16 %v331
    %v368 = vunpack.c.l.b16 %v332
    %v369 = vunpack.c.l.b16 %v333
    %v370 = vunpack.c.l.b16 %v334
    %v371 = vunpack.c.l.b16 %v335
    %v372 = vunpack.c.l.b16 %v336
    %v373 = vunpack.c.l.b16 %v337
    %v374 = vunpack.c.l.b16 %v338
    %v375 = vunpack.c.l.b16 %v339
    %v376 = vunpack.c.l.b16 %v340
    %v377 = vunpack.c.l.b16 %v341
    %v378 = vunpack.c.l.b16 %v342
    %v379 = vunpack.c.l.b16 %v343
    %v380 = vunpack.c.l.b16 %v344
    %v381 = vpack.c.b16 %v366, %v365
    %v382 = vpack.c.b16 %v368, %v367
    %v383 = vpack.c.b16 %v370, %v369
    %v384 = vpack.c.b16 %v372, %v371
    %v385 = vpack.c.b16 %v374, %v373
    %v386 = vpack.c.b16 %v376, %v375
    %v387 = vpack.c.b16 %v378, %v377
    %v388 = vpack.c.b16 %v380, %v379
    %397 = vmatpush.bf16.msra.mxu0 %v388
    %398 = vmatpush.bf16.msra.mxu0 %v387
    %399 = vmatpush.bf16.msra.mxu0 %v386
    %400 = vmatpush.bf16.msra.mxu0 %v385
    %401 = vmatpush.bf16.msra.mxu0 %v384
    %402 = vmatpush.bf16.msra.mxu0 %v383
    %403 = vmatpush.bf16.msra.mxu0 %v382
    %404 = vmatpush.bf16.msra.mxu0 %v381
    %405 = vmatmul.bf16.gmra.mxu0 %v328
    %v406 = vpop.f32.mrf.mxu0
    %v407 = vadd.f32 %v347, %v406
    %v408 = vpop.f32.mrf.mxu0
    %v409 = vadd.f32 %v347, %v408
    %410 = vdwg.mxu0
    %v411 = vmax.f32 %v407, 0.0
    %v412 = vmax.f32 %v409, 0.0
    %413 = vst [vmem:[%s8] sm:$0xff] %v411
    %414 = vst [vmem:[%s8 + $0x8] sm:$0xff] %v412
    // Predicated region
    $region46: #{attention_gcn.1} parent=1 // pred_check
      _
    $region47: #{attention_gcn.1} parent=1 // pred_check_branch
      %416 = sbr.rel (0) target = $region49
    $region48: #{attention_gcn.1} parent=1 // pred_region
      _
    $region49: #{attention_gcn.1} parent=1 // pred_fallthru
      _
    // Predicated region
    $region50: #{attention_gcn.1} parent=1 // pred_check
      _
    $region51: #{attention_gcn.1} parent=1 // pred_check_branch
      %418 = sbr.rel (0) target = $region53
    $region52: #{attention_gcn.1} parent=1 // pred_region
      _
    $region53: #{attention_gcn.1} parent=1 // pred_fallthru
      _
    %419 = vsyncpa [#allocation3], 1
    %420 = vsyncpa [#allocation5], 1

</llo_original>
